<compile_context>
chip_gen: v7x
topology: tpu7x:2x2x1
jax: 0.10.0
libtpu: 0.0.40
codegen_flags: <defaults>
</compile_context>

<pallas_src>
import math

import jax
import jax.numpy as jnp
import numpy as np
from jax import lax
from jax.experimental import pallas as pl
from jax.experimental.pallas import tpu as pltpu


def _ultimate_smoother_kernel(x_ref, coef_ref, o_ref):
    # x_ref / o_ref: (T, tile_r, 128) f32, time-major, lane-dense.
    # coef_ref: (5, tile_r, 128) f32, rows [b1, b2, b3, c2, c3] with
    #           b1 = 1-c1, b2 = 2c1-c2, b3 = -(c1+c3).
    T = x_ref.shape[0]

    b1, b2, b3 = coef_ref[0], coef_ref[1], coef_ref[2]
    c2, c3 = coef_ref[3], coef_ref[4]          # only these stay live in the loop

    # Seed rows: y[0:3] = x[0:3] (the only rows the loop below never rewrites).
    o_ref[0:3] = x_ref[0:3]

    # FIR pre-pass, fully vectorized over time (dense full-vreg VPU work):
    #   f[t] = b1*x[t-1] + b2*x[t-2] + b3*x[t-3],  t in [3, T)
    # staged in o_ref so the serial recurrence only needs 2 mul + 2 add.
    # TODO(synk): chunk this slab over T for very large T*tile_r footprints.
    o_ref[3:] = (b1 * x_ref[2:T - 1]
                 + b2 * x_ref[1:T - 2]
                 + b3 * x_ref[0:T - 3])

    # IIR serial pass: y[t] = f[t] + c2*y[t-1] + c3*y[t-2]; carries live in vregs.
    def body(t, carry):
        s1, s2 = carry                          # y[t-1], y[t-2]
        s = o_ref[t] + c2 * s1 + c3 * s2        # dynamic t on the untiled axis
        o_ref[t] = s
        return s, s1

    n_steps = T - 3
    unroll = True if n_steps <= 64 else 8       # partial unroll amortizes scalar slot
    lax.fori_loop(3, T, body, (x_ref[2], x_ref[1]), unroll=unroll)


def _choose_row_tile(T, R):
    """Rows-of-128-lanes per grid block.

    Small enough that c2/c3 + loop carries stay in vregs and double-buffered
    in/out blocks fit scoped VMEM; large enough to keep slabs dense.  Multiple
    blocks -> 'parallel' grid axis (shards across TensorCores on v7x).
    """
    if R <= 32:
        return R, R                              # single block: block dims == array dims
    r = 32
    while r > 8 and 5 * T * r * 128 * 4 > 20 * 1024 * 1024:
        r //= 2
    r = max(r, 8)                                # multiple of 8 -> legal sublane tiling
    r_pad = pl.cdiv(R, r) * r
    return r, r_pad


def ultimate_smoother(x, period=20):
    """JAX/Pallas port of UltimateSmoother.forward.

    x: (B, T, D) or (T, D).  period: scalar or per-feature (broadcasts against
    the feature dim D, as in the torch module).  Returns (B, T, D) float32.
    """
    x = jnp.asarray(x, jnp.float32)
    if x.ndim == 2:                              # torch: unsqueeze(dim=0)
        x = x[None]
    B, T, D = x.shape
    if T < 4:                                    # recurrence never runs -> clone
        return x

    # --- filter coefficients (hoisted out of the kernel; matches torch exactly,
    #     including the cos(sqrt(2)*180/period) argument).
    p = jnp.asarray(period, jnp.float32)
    a1 = jnp.exp(-math.sqrt(2.0) * math.pi / p)
    c3 = -a1 * a1
    c2 = -2.0 * a1 * jnp.cos(math.sqrt(2.0) * 180.0 / p)
    c1 = (1.0 + c2 - c3) / 4.0
    rows = jnp.stack([1.0 - c1, 2.0 * c1 - c2, -(c1 + c3), c2, c3])   # (5,) or (5,D)
    coef = jnp.broadcast_to(rows.reshape(5, 1, -1), (5, B, D)).reshape(5, B * D)

    # --- time-major, lane-dense packing: (B,T,D) -> (T, R_pad, 128)
    N = B * D
    R = pl.cdiv(N, 128)
    tile_r, R_pad = _choose_row_tile(T, R)
    N_pad = R_pad * 128

    xt = jnp.transpose(x, (1, 0, 2)).reshape(T, N)
    xt = jnp.pad(xt, ((0, 0), (0, N_pad - N))).reshape(T, R_pad, 128)
    coef = jnp.pad(coef, ((0, 0), (0, N_pad - N))).reshape(5, R_pad, 128)

    num_blocks = R_pad // tile_r
    # double-buffered x + out blocks, plus double-buffered coef block
    block_bytes = 4 * 128 * tile_r * (2 * 2 * T + 2 * 5)
    vmem_limit = int(min(max(2 * block_bytes, 16 << 20), 64 << 20))

    out = pl.pallas_call(
        _ultimate_smoother_kernel,
        out_shape=jax.ShapeDtypeStruct((T, R_pad, 128), jnp.float32),
        grid=(num_blocks,),
        in_specs=[
            pl.BlockSpec((T, tile_r, 128), lambda i: (0, i, 0)),   # x (time-major)
            pl.BlockSpec((5, tile_r, 128), lambda i: (0, i, 0)),   # coefficients
        ],
        out_specs=pl.BlockSpec((T, tile_r, 128), lambda i: (0, i, 0)),
        compiler_params=pltpu.CompilerParams(
            dimension_semantics=("parallel",),      # lane-row blocks are independent
            vmem_limit_bytes=vmem_limit),
    )(xt, coef)

    out = out.reshape(T, N_pad)[:, :N].reshape(T, B, D)
    return jnp.transpose(out, (1, 0, 2))


def ultimate_smoother_ref(X, period=20):
    """Numpy reference mirroring the PyTorch forward exactly."""
    X = np.asarray(X, np.float32)
    if X.ndim == 2:
        X = X[None]
    period = np.asarray(period, np.float32)
    a1 = np.exp(-math.sqrt(2.0) * math.pi / period)
    c3 = -a1 ** 2
    c2 = -2.0 * a1 * np.cos(math.sqrt(2.0) * 180.0 / period)
    c1 = (1.0 + c2 - c3) / 4.0
    Xp = np.transpose(X, (1, 0, 2)).copy()            # (T, B, D)
    Xs = Xp.copy()
    for t in range(Xp.shape[0])[3:]:
        Xs[t] = ((1 - c1) * Xp[t - 1] + (2 * c1 - c2) * Xp[t - 2]
                 - (c1 + c3) * Xp[t - 3] + c2 * Xs[t - 1] + c3 * Xs[t - 2])
    return np.transpose(Xs, (1, 0, 2))


if __name__ == "__main__":
    B, T, D = 2, 16, 64                 # B*D = 128 -> exactly one dense lane row
    key = jax.random.PRNGKey(0)
    x = jax.random.normal(key, (B, T, D), dtype=jnp.float32)

    # Scalar period (module default).
    out = jax.block_until_ready(ultimate_smoother(x, period=20))
    ref = ultimate_smoother_ref(np.asarray(x), period=20)
    np.testing.assert_allclose(np.asarray(out), ref, rtol=1e-4, atol=1e-4)

    # Per-feature period list (torch broadcasting across the feature dim).
    periods = np.linspace(10.0, 30.0, D).astype(np.float32)
    out2 = jax.block_until_ready(ultimate_smoother(x, period=periods))
    ref2 = ultimate_smoother_ref(np.asarray(x), period=periods)
    np.testing.assert_allclose(np.asarray(out2), ref2, rtol=1e-4, atol=1e-4)

    print("KERNEL_OK")
</pallas_src>

<mosaic_0001>
module attributes {stable_mosaic.version = 11 : i64} {
  func.func @_ultimate_smoother_kernel(%arg0: i32, %arg1: memref<16x1x128xf32, #tpu.memory_space<vmem>>, %arg2: memref<5x1x128xf32, #tpu.memory_space<vmem>>, %arg3: memref<16x1x128xf32, #tpu.memory_space<vmem>>) attributes {dimension_semantics = [#tpu.dimension_semantics<parallel>], iteration_bounds = array<i64: 1>, scalar_prefetch = 0 : i64, scratch_operands = 0 : i64, tpu.core_type = #tpu.core_type<tc>, window_params = [{transform_indices = @transform_0, window_bounds = array<i64: 16, 1, 128>}, {transform_indices = @transform_1, window_bounds = array<i64: 5, 1, 128>}, {transform_indices = @transform_2, window_bounds = array<i64: 16, 1, 128>}]} {
    %c0 = arith.constant 0 : index
    %c0_0 = arith.constant 0 : index
    %c0_1 = arith.constant 0 : index
    %0 = vector.load %arg2[%c0, %c0_0, %c0_1] : memref<5x1x128xf32, #tpu.memory_space<vmem>>, vector<1x1x128xf32>
    %1 = vector.shape_cast %0 : vector<1x1x128xf32> to vector<1x128xf32>
    %c1 = arith.constant 1 : index
    %c0_2 = arith.constant 0 : index
    %c0_3 = arith.constant 0 : index
    %2 = vector.load %arg2[%c1, %c0_2, %c0_3] : memref<5x1x128xf32, #tpu.memory_space<vmem>>, vector<1x1x128xf32>
    %3 = vector.shape_cast %2 : vector<1x1x128xf32> to vector<1x128xf32>
    %c2 = arith.constant 2 : index
    %c0_4 = arith.constant 0 : index
    %c0_5 = arith.constant 0 : index
    %4 = vector.load %arg2[%c2, %c0_4, %c0_5] : memref<5x1x128xf32, #tpu.memory_space<vmem>>, vector<1x1x128xf32>
    %5 = vector.shape_cast %4 : vector<1x1x128xf32> to vector<1x128xf32>
    %c3 = arith.constant 3 : index
    %c0_6 = arith.constant 0 : index
    %c0_7 = arith.constant 0 : index
    %6 = vector.load %arg2[%c3, %c0_6, %c0_7] : memref<5x1x128xf32, #tpu.memory_space<vmem>>, vector<1x1x128xf32>
    %7 = vector.shape_cast %6 : vector<1x1x128xf32> to vector<1x128xf32>
    %c4 = arith.constant 4 : index
    %c0_8 = arith.constant 0 : index
    %c0_9 = arith.constant 0 : index
    %8 = vector.load %arg2[%c4, %c0_8, %c0_9] : memref<5x1x128xf32, #tpu.memory_space<vmem>>, vector<1x1x128xf32>
    %9 = vector.shape_cast %8 : vector<1x1x128xf32> to vector<1x128xf32>
    %c0_10 = arith.constant 0 : index
    %c0_11 = arith.constant 0 : index
    %c0_12 = arith.constant 0 : index
    %10 = vector.load %arg1[%c0_10, %c0_11, %c0_12] : memref<16x1x128xf32, #tpu.memory_space<vmem>>, vector<3x1x128xf32>
    %c0_13 = arith.constant 0 : index
    %c0_14 = arith.constant 0 : index
    %c0_15 = arith.constant 0 : index
    %11 = vector.load %arg3[%c0_13, %c0_14, %c0_15] : memref<16x1x128xf32, #tpu.memory_space<vmem>>, vector<3x1x128xf32>
    tpu.vector_store %arg3[%c0_13, %c0_14, %c0_15], %10 {strides = array<i32>} : memref<16x1x128xf32, #tpu.memory_space<vmem>>, vector<3x1x128xf32>,
    %c2_16 = arith.constant 2 : index
    %c0_17 = arith.constant 0 : index
    %c0_18 = arith.constant 0 : index
    %12 = vector.load %arg1[%c2_16, %c0_17, %c0_18] : memref<16x1x128xf32, #tpu.memory_space<vmem>>, vector<13x1x128xf32>
    %13 = vector.shape_cast %1 : vector<1x128xf32> to vector<1x1x128xf32>
    %14 = vector.broadcast %13 : vector<1x1x128xf32> to vector<13x1x128xf32>
    %15 = arith.mulf %14, %12 : vector<13x1x128xf32>
    %c1_19 = arith.constant 1 : index
    %c0_20 = arith.constant 0 : index
    %c0_21 = arith.constant 0 : index
    %16 = vector.load %arg1[%c1_19, %c0_20, %c0_21] : memref<16x1x128xf32, #tpu.memory_space<vmem>>, vector<13x1x128xf32>
    %17 = vector.shape_cast %3 : vector<1x128xf32> to vector<1x1x128xf32>
    %18 = vector.broadcast %17 : vector<1x1x128xf32> to vector<13x1x128xf32>
    %19 = arith.mulf %18, %16 : vector<13x1x128xf32>
    %20 = arith.addf %15, %19 : vector<13x1x128xf32>
    %c0_22 = arith.constant 0 : index
    %c0_23 = arith.constant 0 : index
    %c0_24 = arith.constant 0 : index
    %21 = vector.load %arg1[%c0_22, %c0_23, %c0_24] : memref<16x1x128xf32, #tpu.memory_space<vmem>>, vector<13x1x128xf32>
    %22 = vector.shape_cast %5 : vector<1x128xf32> to vector<1x1x128xf32>
    %23 = vector.broadcast %22 : vector<1x1x128xf32> to vector<13x1x128xf32>
    %24 = arith.mulf %23, %21 : vector<13x1x128xf32>
    %25 = arith.addf %20, %24 : vector<13x1x128xf32>
    %c3_25 = arith.constant 3 : index
    %c0_26 = arith.constant 0 : index
    %c0_27 = arith.constant 0 : index
    %26 = vector.load %arg3[%c3_25, %c0_26, %c0_27] : memref<16x1x128xf32, #tpu.memory_space<vmem>>, vector<13x1x128xf32>
    tpu.vector_store %arg3[%c3_25, %c0_26, %c0_27], %25 {strides = array<i32>} : memref<16x1x128xf32, #tpu.memory_space<vmem>>, vector<13x1x128xf32>,
    %c2_28 = arith.constant 2 : index
    %c0_29 = arith.constant 0 : index
    %c0_30 = arith.constant 0 : index
    %27 = vector.load %arg1[%c2_28, %c0_29, %c0_30] : memref<16x1x128xf32, #tpu.memory_space<vmem>>, vector<1x1x128xf32>
    %28 = vector.shape_cast %27 : vector<1x1x128xf32> to vector<1x128xf32>
    %c1_31 = arith.constant 1 : index
    %c0_32 = arith.constant 0 : index
    %c0_33 = arith.constant 0 : index
    %29 = vector.load %arg1[%c1_31, %c0_32, %c0_33] : memref<16x1x128xf32, #tpu.memory_space<vmem>>, vector<1x1x128xf32>
    %30 = vector.shape_cast %29 : vector<1x1x128xf32> to vector<1x128xf32>
    %c3_i32 = arith.constant 3 : i32
    %31 = arith.index_cast %c3_i32 : i32 to index
    %c0_34 = arith.constant 0 : index
    %c0_35 = arith.constant 0 : index
    %32 = vector.load %arg3[%31, %c0_34, %c0_35] : memref<16x1x128xf32, #tpu.memory_space<vmem>>, vector<1x1x128xf32>
    %33 = vector.shape_cast %32 : vector<1x1x128xf32> to vector<1x128xf32>
    %34 = arith.mulf %7, %28 : vector<1x128xf32>
    %35 = arith.addf %33, %34 : vector<1x128xf32>
    %36 = arith.mulf %9, %30 : vector<1x128xf32>
    %37 = arith.addf %35, %36 : vector<1x128xf32>
    %38 = arith.index_cast %c3_i32 : i32 to index
    %c0_36 = arith.constant 0 : index
    %c0_37 = arith.constant 0 : index
    %39 = vector.load %arg3[%38, %c0_36, %c0_37] : memref<16x1x128xf32, #tpu.memory_space<vmem>>, vector<1x1x128xf32>
    %40 = vector.shape_cast %39 : vector<1x1x128xf32> to vector<1x128xf32>
    %41 = vector.shape_cast %37 : vector<1x128xf32> to vector<1x1x128xf32>
    tpu.vector_store %arg3[%38, %c0_36, %c0_37], %41 {strides = array<i32>} : memref<16x1x128xf32, #tpu.memory_space<vmem>>, vector<1x1x128xf32>,
    %c4_i32 = arith.constant 4 : i32
    %42 = arith.index_cast %c4_i32 : i32 to index
    %c0_38 = arith.constant 0 : index
    %c0_39 = arith.constant 0 : index
    %43 = vector.load %arg3[%42, %c0_38, %c0_39] : memref<16x1x128xf32, #tpu.memory_space<vmem>>, vector<1x1x128xf32>
    %44 = vector.shape_cast %43 : vector<1x1x128xf32> to vector<1x128xf32>
    %45 = arith.mulf %7, %37 : vector<1x128xf32>
    %46 = arith.addf %44, %45 : vector<1x128xf32>
    %47 = arith.mulf %9, %28 : vector<1x128xf32>
    %48 = arith.addf %46, %47 : vector<1x128xf32>
    %49 = arith.index_cast %c4_i32 : i32 to index
    %c0_40 = arith.constant 0 : index
    %c0_41 = arith.constant 0 : index
    %50 = vector.load %arg3[%49, %c0_40, %c0_41] : memref<16x1x128xf32, #tpu.memory_space<vmem>>, vector<1x1x128xf32>
    %51 = vector.shape_cast %50 : vector<1x1x128xf32> to vector<1x128xf32>
    %52 = vector.shape_cast %48 : vector<1x128xf32> to vector<1x1x128xf32>
    tpu.vector_store %arg3[%49, %c0_40, %c0_41], %52 {strides = array<i32>} : memref<16x1x128xf32, #tpu.memory_space<vmem>>, vector<1x1x128xf32>,
    %c5_i32 = arith.constant 5 : i32
    %53 = arith.index_cast %c5_i32 : i32 to index
    %c0_42 = arith.constant 0 : index
    %c0_43 = arith.constant 0 : index
    %54 = vector.load %arg3[%53, %c0_42, %c0_43] : memref<16x1x128xf32, #tpu.memory_space<vmem>>, vector<1x1x128xf32>
    %55 = vector.shape_cast %54 : vector<1x1x128xf32> to vector<1x128xf32>
    %56 = arith.mulf %7, %48 : vector<1x128xf32>
    %57 = arith.addf %55, %56 : vector<1x128xf32>
    %58 = arith.mulf %9, %37 : vector<1x128xf32>
    %59 = arith.addf %57, %58 : vector<1x128xf32>
    %60 = arith.index_cast %c5_i32 : i32 to index
    %c0_44 = arith.constant 0 : index
    %c0_45 = arith.constant 0 : index
    %61 = vector.load %arg3[%60, %c0_44, %c0_45] : memref<16x1x128xf32, #tpu.memory_space<vmem>>, vector<1x1x128xf32>
    %62 = vector.shape_cast %61 : vector<1x1x128xf32> to vector<1x128xf32>
    %63 = vector.shape_cast %59 : vector<1x128xf32> to vector<1x1x128xf32>
    tpu.vector_store %arg3[%60, %c0_44, %c0_45], %63 {strides = array<i32>} : memref<16x1x128xf32, #tpu.memory_space<vmem>>, vector<1x1x128xf32>,
    %c6_i32 = arith.constant 6 : i32
    %64 = arith.index_cast %c6_i32 : i32 to index
    %c0_46 = arith.constant 0 : index
    %c0_47 = arith.constant 0 : index
    %65 = vector.load %arg3[%64, %c0_46, %c0_47] : memref<16x1x128xf32, #tpu.memory_space<vmem>>, vector<1x1x128xf32>
    %66 = vector.shape_cast %65 : vector<1x1x128xf32> to vector<1x128xf32>
    %67 = arith.mulf %7, %59 : vector<1x128xf32>
    %68 = arith.addf %66, %67 : vector<1x128xf32>
    %69 = arith.mulf %9, %48 : vector<1x128xf32>
    %70 = arith.addf %68, %69 : vector<1x128xf32>
    %71 = arith.index_cast %c6_i32 : i32 to index
    %c0_48 = arith.constant 0 : index
    %c0_49 = arith.constant 0 : index
    %72 = vector.load %arg3[%71, %c0_48, %c0_49] : memref<16x1x128xf32, #tpu.memory_space<vmem>>, vector<1x1x128xf32>
    %73 = vector.shape_cast %72 : vector<1x1x128xf32> to vector<1x128xf32>
    %74 = vector.shape_cast %70 : vector<1x128xf32> to vector<1x1x128xf32>
    tpu.vector_store %arg3[%71, %c0_48, %c0_49], %74 {strides = array<i32>} : memref<16x1x128xf32, #tpu.memory_space<vmem>>, vector<1x1x128xf32>,
    %c7_i32 = arith.constant 7 : i32
    %75 = arith.index_cast %c7_i32 : i32 to index
    %c0_50 = arith.constant 0 : index
    %c0_51 = arith.constant 0 : index
    %76 = vector.load %arg3[%75, %c0_50, %c0_51] : memref<16x1x128xf32, #tpu.memory_space<vmem>>, vector<1x1x128xf32>
    %77 = vector.shape_cast %76 : vector<1x1x128xf32> to vector<1x128xf32>
    %78 = arith.mulf %7, %70 : vector<1x128xf32>
    %79 = arith.addf %77, %78 : vector<1x128xf32>
    %80 = arith.mulf %9, %59 : vector<1x128xf32>
    %81 = arith.addf %79, %80 : vector<1x128xf32>
    %82 = arith.index_cast %c7_i32 : i32 to index
    %c0_52 = arith.constant 0 : index
    %c0_53 = arith.constant 0 : index
    %83 = vector.load %arg3[%82, %c0_52, %c0_53] : memref<16x1x128xf32, #tpu.memory_space<vmem>>, vector<1x1x128xf32>
    %84 = vector.shape_cast %83 : vector<1x1x128xf32> to vector<1x128xf32>
    %85 = vector.shape_cast %81 : vector<1x128xf32> to vector<1x1x128xf32>
    tpu.vector_store %arg3[%82, %c0_52, %c0_53], %85 {strides = array<i32>} : memref<16x1x128xf32, #tpu.memory_space<vmem>>, vector<1x1x128xf32>,
    %c8_i32 = arith.constant 8 : i32
    %86 = arith.index_cast %c8_i32 : i32 to index
    %c0_54 = arith.constant 0 : index
    %c0_55 = arith.constant 0 : index
    %87 = vector.load %arg3[%86, %c0_54, %c0_55] : memref<16x1x128xf32, #tpu.memory_space<vmem>>, vector<1x1x128xf32>
    %88 = vector.shape_cast %87 : vector<1x1x128xf32> to vector<1x128xf32>
    %89 = arith.mulf %7, %81 : vector<1x128xf32>
    %90 = arith.addf %88, %89 : vector<1x128xf32>
    %91 = arith.mulf %9, %70 : vector<1x128xf32>
    %92 = arith.addf %90, %91 : vector<1x128xf32>
    %93 = arith.index_cast %c8_i32 : i32 to index
    %c0_56 = arith.constant 0 : index
    %c0_57 = arith.constant 0 : index
    %94 = vector.load %arg3[%93, %c0_56, %c0_57] : memref<16x1x128xf32, #tpu.memory_space<vmem>>, vector<1x1x128xf32>
    %95 = vector.shape_cast %94 : vector<1x1x128xf32> to vector<1x128xf32>
    %96 = vector.shape_cast %92 : vector<1x128xf32> to vector<1x1x128xf32>
    tpu.vector_store %arg3[%93, %c0_56, %c0_57], %96 {strides = array<i32>} : memref<16x1x128xf32, #tpu.memory_space<vmem>>, vector<1x1x128xf32>,
    %c9_i32 = arith.constant 9 : i32
    %97 = arith.index_cast %c9_i32 : i32 to index
    %c0_58 = arith.constant 0 : index
    %c0_59 = arith.constant 0 : index
    %98 = vector.load %arg3[%97, %c0_58, %c0_59] : memref<16x1x128xf32, #tpu.memory_space<vmem>>, vector<1x1x128xf32>
    %99 = vector.shape_cast %98 : vector<1x1x128xf32> to vector<1x128xf32>
    %100 = arith.mulf %7, %92 : vector<1x128xf32>
    %101 = arith.addf %99, %100 : vector<1x128xf32>
    %102 = arith.mulf %9, %81 : vector<1x128xf32>
    %103 = arith.addf %101, %102 : vector<1x128xf32>
    %104 = arith.index_cast %c9_i32 : i32 to index
    %c0_60 = arith.constant 0 : index
    %c0_61 = arith.constant 0 : index
    %105 = vector.load %arg3[%104, %c0_60, %c0_61] : memref<16x1x128xf32, #tpu.memory_space<vmem>>, vector<1x1x128xf32>
    %106 = vector.shape_cast %105 : vector<1x1x128xf32> to vector<1x128xf32>
    %107 = vector.shape_cast %103 : vector<1x128xf32> to vector<1x1x128xf32>
    tpu.vector_store %arg3[%104, %c0_60, %c0_61], %107 {strides = array<i32>} : memref<16x1x128xf32, #tpu.memory_space<vmem>>, vector<1x1x128xf32>,
    %c10_i32 = arith.constant 10 : i32
    %108 = arith.index_cast %c10_i32 : i32 to index
    %c0_62 = arith.constant 0 : index
    %c0_63 = arith.constant 0 : index
    %109 = vector.load %arg3[%108, %c0_62, %c0_63] : memref<16x1x128xf32, #tpu.memory_space<vmem>>, vector<1x1x128xf32>
    %110 = vector.shape_cast %109 : vector<1x1x128xf32> to vector<1x128xf32>
    %111 = arith.mulf %7, %103 : vector<1x128xf32>
    %112 = arith.addf %110, %111 : vector<1x128xf32>
    %113 = arith.mulf %9, %92 : vector<1x128xf32>
    %114 = arith.addf %112, %113 : vector<1x128xf32>
    %115 = arith.index_cast %c10_i32 : i32 to index
    %c0_64 = arith.constant 0 : index
    %c0_65 = arith.constant 0 : index
    %116 = vector.load %arg3[%115, %c0_64, %c0_65] : memref<16x1x128xf32, #tpu.memory_space<vmem>>, vector<1x1x128xf32>
    %117 = vector.shape_cast %116 : vector<1x1x128xf32> to vector<1x128xf32>
    %118 = vector.shape_cast %114 : vector<1x128xf32> to vector<1x1x128xf32>
    tpu.vector_store %arg3[%115, %c0_64, %c0_65], %118 {strides = array<i32>} : memref<16x1x128xf32, #tpu.memory_space<vmem>>, vector<1x1x128xf32>,
    %c11_i32 = arith.constant 11 : i32
    %119 = arith.index_cast %c11_i32 : i32 to index
    %c0_66 = arith.constant 0 : index
    %c0_67 = arith.constant 0 : index
    %120 = vector.load %arg3[%119, %c0_66, %c0_67] : memref<16x1x128xf32, #tpu.memory_space<vmem>>, vector<1x1x128xf32>
    %121 = vector.shape_cast %120 : vector<1x1x128xf32> to vector<1x128xf32>
    %122 = arith.mulf %7, %114 : vector<1x128xf32>
    %123 = arith.addf %121, %122 : vector<1x128xf32>
    %124 = arith.mulf %9, %103 : vector<1x128xf32>
    %125 = arith.addf %123, %124 : vector<1x128xf32>
    %126 = arith.index_cast %c11_i32 : i32 to index
    %c0_68 = arith.constant 0 : index
    %c0_69 = arith.constant 0 : index
    %127 = vector.load %arg3[%126, %c0_68, %c0_69] : memref<16x1x128xf32, #tpu.memory_space<vmem>>, vector<1x1x128xf32>
    %128 = vector.shape_cast %127 : vector<1x1x128xf32> to vector<1x128xf32>
    %129 = vector.shape_cast %125 : vector<1x128xf32> to vector<1x1x128xf32>
    tpu.vector_store %arg3[%126, %c0_68, %c0_69], %129 {strides = array<i32>} : memref<16x1x128xf32, #tpu.memory_space<vmem>>, vector<1x1x128xf32>,
    %c12_i32 = arith.constant 12 : i32
    %130 = arith.index_cast %c12_i32 : i32 to index
    %c0_70 = arith.constant 0 : index
    %c0_71 = arith.constant 0 : index
    %131 = vector.load %arg3[%130, %c0_70, %c0_71] : memref<16x1x128xf32, #tpu.memory_space<vmem>>, vector<1x1x128xf32>
    %132 = vector.shape_cast %131 : vector<1x1x128xf32> to vector<1x128xf32>
    %133 = arith.mulf %7, %125 : vector<1x128xf32>
    %134 = arith.addf %132, %133 : vector<1x128xf32>
    %135 = arith.mulf %9, %114 : vector<1x128xf32>
    %136 = arith.addf %134, %135 : vector<1x128xf32>
    %137 = arith.index_cast %c12_i32 : i32 to index
    %c0_72 = arith.constant 0 : index
    %c0_73 = arith.constant 0 : index
    %138 = vector.load %arg3[%137, %c0_72, %c0_73] : memref<16x1x128xf32, #tpu.memory_space<vmem>>, vector<1x1x128xf32>
    %139 = vector.shape_cast %138 : vector<1x1x128xf32> to vector<1x128xf32>
    %140 = vector.shape_cast %136 : vector<1x128xf32> to vector<1x1x128xf32>
    tpu.vector_store %arg3[%137, %c0_72, %c0_73], %140 {strides = array<i32>} : memref<16x1x128xf32, #tpu.memory_space<vmem>>, vector<1x1x128xf32>,
    %c13_i32 = arith.constant 13 : i32
    %141 = arith.index_cast %c13_i32 : i32 to index
    %c0_74 = arith.constant 0 : index
    %c0_75 = arith.constant 0 : index
    %142 = vector.load %arg3[%141, %c0_74, %c0_75] : memref<16x1x128xf32, #tpu.memory_space<vmem>>, vector<1x1x128xf32>
    %143 = vector.shape_cast %142 : vector<1x1x128xf32> to vector<1x128xf32>
    %144 = arith.mulf %7, %136 : vector<1x128xf32>
    %145 = arith.addf %143, %144 : vector<1x128xf32>
    %146 = arith.mulf %9, %125 : vector<1x128xf32>
    %147 = arith.addf %145, %146 : vector<1x128xf32>
    %148 = arith.index_cast %c13_i32 : i32 to index
    %c0_76 = arith.constant 0 : index
    %c0_77 = arith.constant 0 : index
    %149 = vector.load %arg3[%148, %c0_76, %c0_77] : memref<16x1x128xf32, #tpu.memory_space<vmem>>, vector<1x1x128xf32>
    %150 = vector.shape_cast %149 : vector<1x1x128xf32> to vector<1x128xf32>
    %151 = vector.shape_cast %147 : vector<1x128xf32> to vector<1x1x128xf32>
    tpu.vector_store %arg3[%148, %c0_76, %c0_77], %151 {strides = array<i32>} : memref<16x1x128xf32, #tpu.memory_space<vmem>>, vector<1x1x128xf32>,
    %c14_i32 = arith.constant 14 : i32
    %152 = arith.index_cast %c14_i32 : i32 to index
    %c0_78 = arith.constant 0 : index
    %c0_79 = arith.constant 0 : index
    %153 = vector.load %arg3[%152, %c0_78, %c0_79] : memref<16x1x128xf32, #tpu.memory_space<vmem>>, vector<1x1x128xf32>
    %154 = vector.shape_cast %153 : vector<1x1x128xf32> to vector<1x128xf32>
    %155 = arith.mulf %7, %147 : vector<1x128xf32>
    %156 = arith.addf %154, %155 : vector<1x128xf32>
    %157 = arith.mulf %9, %136 : vector<1x128xf32>
    %158 = arith.addf %156, %157 : vector<1x128xf32>
    %159 = arith.index_cast %c14_i32 : i32 to index
    %c0_80 = arith.constant 0 : index
    %c0_81 = arith.constant 0 : index
    %160 = vector.load %arg3[%159, %c0_80, %c0_81] : memref<16x1x128xf32, #tpu.memory_space<vmem>>, vector<1x1x128xf32>
    %161 = vector.shape_cast %160 : vector<1x1x128xf32> to vector<1x128xf32>
    %162 = vector.shape_cast %158 : vector<1x128xf32> to vector<1x1x128xf32>
    tpu.vector_store %arg3[%159, %c0_80, %c0_81], %162 {strides = array<i32>} : memref<16x1x128xf32, #tpu.memory_space<vmem>>, vector<1x1x128xf32>,
    %c15_i32 = arith.constant 15 : i32
    %163 = arith.index_cast %c15_i32 : i32 to index
    %c0_82 = arith.constant 0 : index
    %c0_83 = arith.constant 0 : index
    %164 = vector.load %arg3[%163, %c0_82, %c0_83] : memref<16x1x128xf32, #tpu.memory_space<vmem>>, vector<1x1x128xf32>
    %165 = vector.shape_cast %164 : vector<1x1x128xf32> to vector<1x128xf32>
    %166 = arith.mulf %7, %158 : vector<1x128xf32>
    %167 = arith.addf %165, %166 : vector<1x128xf32>
    %168 = arith.mulf %9, %147 : vector<1x128xf32>
    %169 = arith.addf %167, %168 : vector<1x128xf32>
    %170 = arith.index_cast %c15_i32 : i32 to index
    %c0_84 = arith.constant 0 : index
    %c0_85 = arith.constant 0 : index
    %171 = vector.load %arg3[%170, %c0_84, %c0_85] : memref<16x1x128xf32, #tpu.memory_space<vmem>>, vector<1x1x128xf32>
    %172 = vector.shape_cast %171 : vector<1x1x128xf32> to vector<1x128xf32>
    %173 = vector.shape_cast %169 : vector<1x128xf32> to vector<1x1x128xf32>
    tpu.vector_store %arg3[%170, %c0_84, %c0_85], %173 {strides = array<i32>} : memref<16x1x128xf32, #tpu.memory_space<vmem>>, vector<1x1x128xf32>,
    %c13_i32_86 = arith.constant 13 : i32
    return
  }
  func.func @transform_0(%arg0: i32) -> (i32, i32, i32) {
    %c0_i32 = arith.constant 0 : i32
    %c0_i32_0 = arith.constant 0 : i32
    %c0_i32_1 = arith.constant 0 : i32
    return %c0_i32, %arg0, %c0_i32_0 : i32, i32, i32
  }
  func.func @transform_1(%arg0: i32) -> (i32, i32, i32) {
    %c0_i32 = arith.constant 0 : i32
    %c0_i32_0 = arith.constant 0 : i32
    %c0_i32_1 = arith.constant 0 : i32
    return %c0_i32, %arg0, %c0_i32_0 : i32, i32, i32
  }
  func.func @transform_2(%arg0: i32) -> (i32, i32, i32) {
    %c0_i32 = arith.constant 0 : i32
    %c0_i32_0 = arith.constant 0 : i32
    %c0_i32_1 = arith.constant 0 : i32
    return %c0_i32, %arg0, %c0_i32_0 : i32, i32, i32
  }
}

</mosaic_0001>

<llo_original>
// kernel: tpu_custom_call.1
$region0: #{tpu_custom_call.1}
  #allocation0 [shape = 'u32[]', space=smem, size = 0x4, offset = 0x4, fixed_abs, tag = 'smem constant byte address 0x4 - core index']
  #allocation1 [shape = 'u32[144,128]{1,0:T(1,128)}', space=vmem, size = 0x12000, scoped, tag = 'internal scratch']
  %s0 = inlined_call_operand.hbm [shape: f32[16,1,128], index: 0, kind: input, shape index: {}]
  %s1 = inlined_call_operand.hbm [shape: f32[5,1,128], index: 1, kind: input, shape index: {}]
  %s2 = inlined_call_operand.hbm [shape: f32[16,1,128], index: 2, kind: output, shape index: {}]
  %s3 = sld [smem:[#allocation0]]
  $region26: #{tpu_custom_call.1} parent=0
    _
  %s5 = ssub.s32 1, %s3
  %s6 = scalar_select 0, %s5, %s3
  $region1: #{tpu_custom_call.1} parent=0
    #allocation2 [shape = 'u8[8192]{0}', space=vmem, size = 0x2000, scoped, tag = 'input window, operand 0, single buffered']
    #allocation3 [shape = 's32[1]{0}', space=sflag, size = 0x4, scoped, tag = 'scoped memory for tpu_custom_call.1']
    #allocation4 [shape = 's32[1]{0}', space=sflag, size = 0x4, scoped, tag = 'scoped memory for tpu_custom_call.1']
    #allocation5 [shape = 'u8[2560]{0}', space=vmem, size = 0xc00, scoped, tag = 'input window, operand 1, single buffered']
    #allocation6 [shape = 's32[1]{0}', space=sflag, size = 0x4, scoped, tag = 'scoped memory for tpu_custom_call.1']
    #allocation7 [shape = 'u8[8192]{0}', space=vmem, size = 0x2000, scoped, tag = 'output window, operand 0, single buffered']
    %7 = vsyncpa [#allocation3], 0
    %8 = vsyncpa [#allocation6], 0
    %9 = vsyncpa [#allocation4], 0
    // Predicated region
    $region2: #{tpu_custom_call.1} parent=1 // pred_check
      _
    $region3: #{tpu_custom_call.1} parent=1 // pred_check_branch
      %11 = sbr.rel (0) target = $region5
    $region4: #{tpu_custom_call.1} parent=1 // pred_region
      %s13 = ssub.s32 256, 256
      %14 = vsyncadd [#allocation3], %s13
      %s15 = sshll.u32 [#allocation2], 4
      %s16 = int_to_ptr.vmem [resolvable:$true] %s15
      %21 = dma.hbm_to_vmem [thread:$0]  %s0, 256, %s16, [#allocation3], 16, 16, 1
    $region5: #{tpu_custom_call.1} parent=1 // pred_fallthru
      _
    // Predicated region
    $region6: #{tpu_custom_call.1} parent=1 // pred_check
      _
    $region7: #{tpu_custom_call.1} parent=1 // pred_check_branch
      %23 = sbr.rel (0) target = $region9
    $region8: #{tpu_custom_call.1} parent=1 // pred_region
      %s25 = ssub.s32 80, 80
      %26 = vsyncadd [#allocation6], %s25
      %s27 = sshll.u32 [#allocation5], 4
      %s28 = int_to_ptr.vmem [resolvable:$true] %s27
      %33 = dma.hbm_to_vmem [thread:$0]  %s1, 80, %s28, [#allocation6], 16, 16, 1
    $region9: #{tpu_custom_call.1} parent=1 // pred_fallthru
      _
    // Predicated region
    $region10: #{tpu_custom_call.1} parent=1 // pred_check
      _
    $region11: #{tpu_custom_call.1} parent=1 // pred_check_branch
      %35 = sbr.rel (0) target = $region13
    $region12: #{tpu_custom_call.1} parent=1 // pred_region
      %36 = dma.done [#allocation3], 256
    $region13: #{tpu_custom_call.1} parent=1 // pred_fallthru
      _
    // Predicated region
    $region14: #{tpu_custom_call.1} parent=1 // pred_check
      _
    $region15: #{tpu_custom_call.1} parent=1 // pred_check_branch
      %38 = sbr.rel (0) target = $region17
    $region16: #{tpu_custom_call.1} parent=1 // pred_region
      %39 = dma.done [#allocation6], 80
    $region17: #{tpu_custom_call.1} parent=1 // pred_fallthru
      _
    %v40 = vld [vmem:[#allocation5] sm:$0x1]
    %s41 = scalar_lea.vmem [#allocation5], 1
    %v42 = vld [vmem:[%s41] sm:$0x1]
    %s43 = scalar_lea.vmem [#allocation5], 2
    %v44 = vld [vmem:[%s43] sm:$0x1]
    %s45 = scalar_lea.vmem [#allocation5], 3
    %v46 = vld [vmem:[%s45] sm:$0x1]
    %s47 = scalar_lea.vmem [#allocation5], 4
    %v48 = vld [vmem:[%s47] sm:$0x1]
    %v49 = vld [vmem:[#allocation2] sm:$0x1]
    %v50 = vld [vmem:[#allocation2 + $0x1] sm:$0x1]
    %v51 = vld [vmem:[#allocation2 + $0x2] sm:$0x1]
    %52 = vst [vmem:[#allocation7] sm:$0x1] %v49
    %53 = vst [vmem:[#allocation7 + $0x1] sm:$0x1] %v50
    %54 = vst [vmem:[#allocation7 + $0x2] sm:$0x1] %v51
    %s55 = scalar_lea.vmem [#allocation2], 2
    %v56 = vld [vmem:[%s55] sm:$0x1]
    %v57 = vld [vmem:[%s55 + $0x1] sm:$0x1]
    %v58 = vld [vmem:[%s55 + $0x2] sm:$0x1]
    %v59 = vld [vmem:[%s55 + $0x3] sm:$0x1]
    %v60 = vld [vmem:[%s55 + $0x4] sm:$0x1]
    %v61 = vld [vmem:[%s55 + $0x5] sm:$0x1]
    %v62 = vld [vmem:[%s55 + $0x6] sm:$0x1]
    %v63 = vld [vmem:[%s55 + $0x7] sm:$0x1]
    %v64 = vld [vmem:[%s55 + $0x8] sm:$0x1]
    %v65 = vld [vmem:[%s55 + $0x9] sm:$0x1]
    %v66 = vld [vmem:[%s55 + $0xa] sm:$0x1]
    %v67 = vld [vmem:[%s55 + $0xb] sm:$0x1]
    %v68 = vld [vmem:[%s55 + $0xc] sm:$0x1]
    %v69 = vmul.f32 %v40, %v56
    %v70 = vmul.f32 %v40, %v57
    %v71 = vmul.f32 %v40, %v58
    %v72 = vmul.f32 %v40, %v59
    %v73 = vmul.f32 %v40, %v60
    %v74 = vmul.f32 %v40, %v61
    %v75 = vmul.f32 %v40, %v62
    %v76 = vmul.f32 %v40, %v63
    %v77 = vmul.f32 %v40, %v64
    %v78 = vmul.f32 %v40, %v65
    %v79 = vmul.f32 %v40, %v66
    %v80 = vmul.f32 %v40, %v67
    %v81 = vmul.f32 %v40, %v68
    %s82 = scalar_lea.vmem [#allocation2], 1
    %v83 = vld [vmem:[%s82] sm:$0x1]
    %v84 = vld [vmem:[%s82 + $0x1] sm:$0x1]
    %v85 = vld [vmem:[%s82 + $0x2] sm:$0x1]
    %v86 = vld [vmem:[%s82 + $0x3] sm:$0x1]
    %v87 = vld [vmem:[%s82 + $0x4] sm:$0x1]
    %v88 = vld [vmem:[%s82 + $0x5] sm:$0x1]
    %v89 = vld [vmem:[%s82 + $0x6] sm:$0x1]
    %v90 = vld [vmem:[%s82 + $0x7] sm:$0x1]
    %v91 = vld [vmem:[%s82 + $0x8] sm:$0x1]
    %v92 = vld [vmem:[%s82 + $0x9] sm:$0x1]
    %v93 = vld [vmem:[%s82 + $0xa] sm:$0x1]
    %v94 = vld [vmem:[%s82 + $0xb] sm:$0x1]
    %v95 = vld [vmem:[%s82 + $0xc] sm:$0x1]
    %v96 = vmul.f32 %v42, %v83
    %v97 = vmul.f32 %v42, %v84
    %v98 = vmul.f32 %v42, %v85
    %v99 = vmul.f32 %v42, %v86
    %v100 = vmul.f32 %v42, %v87
    %v101 = vmul.f32 %v42, %v88
    %v102 = vmul.f32 %v42, %v89
    %v103 = vmul.f32 %v42, %v90
    %v104 = vmul.f32 %v42, %v91
    %v105 = vmul.f32 %v42, %v92
    %v106 = vmul.f32 %v42, %v93
    %v107 = vmul.f32 %v42, %v94
    %v108 = vmul.f32 %v42, %v95
    %v109 = vadd.f32 %v69, %v96
    %v110 = vadd.f32 %v70, %v97
    %v111 = vadd.f32 %v71, %v98
    %v112 = vadd.f32 %v72, %v99
    %v113 = vadd.f32 %v73, %v100
    %v114 = vadd.f32 %v74, %v101
    %v115 = vadd.f32 %v75, %v102
    %v116 = vadd.f32 %v76, %v103
    %v117 = vadd.f32 %v77, %v104
    %v118 = vadd.f32 %v78, %v105
    %v119 = vadd.f32 %v79, %v106
    %v120 = vadd.f32 %v80, %v107
    %v121 = vadd.f32 %v81, %v108
    %v122 = vld [vmem:[#allocation2] sm:$0x1]
    %v123 = vld [vmem:[#allocation2 + $0x1] sm:$0x1]
    %v124 = vld [vmem:[#allocation2 + $0x2] sm:$0x1]
    %v125 = vld [vmem:[#allocation2 + $0x3] sm:$0x1]
    %v126 = vld [vmem:[#allocation2 + $0x4] sm:$0x1]
    %v127 = vld [vmem:[#allocation2 + $0x5] sm:$0x1]
    %v128 = vld [vmem:[#allocation2 + $0x6] sm:$0x1]
    %v129 = vld [vmem:[#allocation2 + $0x7] sm:$0x1]
    %v130 = vld [vmem:[#allocation2 + $0x8] sm:$0x1]
    %v131 = vld [vmem:[#allocation2 + $0x9] sm:$0x1]
    %v132 = vld [vmem:[#allocation2 + $0xa] sm:$0x1]
    %v133 = vld [vmem:[#allocation2 + $0xb] sm:$0x1]
    %v134 = vld [vmem:[#allocation2 + $0xc] sm:$0x1]
    %v135 = vmul.f32 %v44, %v122
    %v136 = vmul.f32 %v44, %v123
    %v137 = vmul.f32 %v44, %v124
    %v138 = vmul.f32 %v44, %v125
    %v139 = vmul.f32 %v44, %v126
    %v140 = vmul.f32 %v44, %v127
    %v141 = vmul.f32 %v44, %v128
    %v142 = vmul.f32 %v44, %v129
    %v143 = vmul.f32 %v44, %v130
    %v144 = vmul.f32 %v44, %v131
    %v145 = vmul.f32 %v44, %v132
    %v146 = vmul.f32 %v44, %v133
    %v147 = vmul.f32 %v44, %v134
    %v148 = vadd.f32 %v109, %v135
    %v149 = vadd.f32 %v110, %v136
    %v150 = vadd.f32 %v111, %v137
    %v151 = vadd.f32 %v112, %v138
    %v152 = vadd.f32 %v113, %v139
    %v153 = vadd.f32 %v114, %v140
    %v154 = vadd.f32 %v115, %v141
    %v155 = vadd.f32 %v116, %v142
    %v156 = vadd.f32 %v117, %v143
    %v157 = vadd.f32 %v118, %v144
    %v158 = vadd.f32 %v119, %v145
    %v159 = vadd.f32 %v120, %v146
    %v160 = vadd.f32 %v121, %v147
    %s161 = scalar_lea.vmem [#allocation7], 3
    %162 = vst [vmem:[%s161] sm:$0x1] %v148
    %163 = vst [vmem:[%s161 + $0x1] sm:$0x1] %v149
    %164 = vst [vmem:[%s161 + $0x2] sm:$0x1] %v150
    %165 = vst [vmem:[%s161 + $0x3] sm:$0x1] %v151
    %166 = vst [vmem:[%s161 + $0x4] sm:$0x1] %v152
    %167 = vst [vmem:[%s161 + $0x5] sm:$0x1] %v153
    %168 = vst [vmem:[%s161 + $0x6] sm:$0x1] %v154
    %169 = vst [vmem:[%s161 + $0x7] sm:$0x1] %v155
    %170 = vst [vmem:[%s161 + $0x8] sm:$0x1] %v156
    %171 = vst [vmem:[%s161 + $0x9] sm:$0x1] %v157
    %172 = vst [vmem:[%s161 + $0xa] sm:$0x1] %v158
    %173 = vst [vmem:[%s161 + $0xb] sm:$0x1] %v159
    %174 = vst [vmem:[%s161 + $0xc] sm:$0x1] %v160
    %v175 = vld [vmem:[%s55] sm:$0x1]
    %v176 = vld [vmem:[%s82] sm:$0x1]
    %v177 = vld [vmem:[%s161] sm:$0x1]
    %v178 = vmul.f32 %v46, %v175
    %v179 = vadd.f32 %v177, %v178
    %v180 = vmul.f32 %v48, %v176
    %v181 = vadd.f32 %v179, %v180
    %182 = vst [vmem:[%s161] sm:$0x1] %v181
    %s183 = scalar_lea.vmem [#allocation7], 4
    %v184 = vld [vmem:[%s183] sm:$0x1]
    %v185 = vmul.f32 %v46, %v181
    %v186 = vadd.f32 %v184, %v185
    %v187 = vmul.f32 %v48, %v175
    %v188 = vadd.f32 %v186, %v187
    %189 = vst [vmem:[%s183] sm:$0x1] %v188
    %s190 = scalar_lea.vmem [#allocation7], 5
    %v191 = vld [vmem:[%s190] sm:$0x1]
    %v192 = vmul.f32 %v46, %v188
    %v193 = vadd.f32 %v191, %v192
    %v194 = vmul.f32 %v48, %v181
    %v195 = vadd.f32 %v193, %v194
    %196 = vst [vmem:[%s190] sm:$0x1] %v195
    %s197 = scalar_lea.vmem [#allocation7], 6
    %v198 = vld [vmem:[%s197] sm:$0x1]
    %v199 = vmul.f32 %v46, %v195
    %v200 = vadd.f32 %v198, %v199
    %v201 = vmul.f32 %v48, %v188
    %v202 = vadd.f32 %v200, %v201
    %203 = vst [vmem:[%s197] sm:$0x1] %v202
    %s204 = scalar_lea.vmem [#allocation7], 7
    %v205 = vld [vmem:[%s204] sm:$0x1]
    %v206 = vmul.f32 %v46, %v202
    %v207 = vadd.f32 %v205, %v206
    %v208 = vmul.f32 %v48, %v195
    %v209 = vadd.f32 %v207, %v208
    %210 = vst [vmem:[%s204] sm:$0x1] %v209
    %s211 = scalar_lea.vmem [#allocation7], 8
    %v212 = vld [vmem:[%s211] sm:$0x1]
    %v213 = vmul.f32 %v46, %v209
    %v214 = vadd.f32 %v212, %v213
    %v215 = vmul.f32 %v48, %v202
    %v216 = vadd.f32 %v214, %v215
    %217 = vst [vmem:[%s211] sm:$0x1] %v216
    %s218 = scalar_lea.vmem [#allocation7], 9
    %v219 = vld [vmem:[%s218] sm:$0x1]
    %v220 = vmul.f32 %v46, %v216
    %v221 = vadd.f32 %v219, %v220
    %v222 = vmul.f32 %v48, %v209
    %v223 = vadd.f32 %v221, %v222
    %224 = vst [vmem:[%s218] sm:$0x1] %v223
    %s225 = scalar_lea.vmem [#allocation7], 10
    %v226 = vld [vmem:[%s225] sm:$0x1]
    %v227 = vmul.f32 %v46, %v223
    %v228 = vadd.f32 %v226, %v227
    %v229 = vmul.f32 %v48, %v216
    %v230 = vadd.f32 %v228, %v229
    %231 = vst [vmem:[%s225] sm:$0x1] %v230
    %s232 = scalar_lea.vmem [#allocation7], 11
    %v233 = vld [vmem:[%s232] sm:$0x1]
    %v234 = vmul.f32 %v46, %v230
    %v235 = vadd.f32 %v233, %v234
    %v236 = vmul.f32 %v48, %v223
    %v237 = vadd.f32 %v235, %v236
    %238 = vst [vmem:[%s232] sm:$0x1] %v237
    %s239 = scalar_lea.vmem [#allocation7], 12
    %v240 = vld [vmem:[%s239] sm:$0x1]
    %v241 = vmul.f32 %v46, %v237
    %v242 = vadd.f32 %v240, %v241
    %v243 = vmul.f32 %v48, %v230
    %v244 = vadd.f32 %v242, %v243
    %245 = vst [vmem:[%s239] sm:$0x1] %v244
    %s246 = scalar_lea.vmem [#allocation7], 13
    %v247 = vld [vmem:[%s246] sm:$0x1]
    %v248 = vmul.f32 %v46, %v244
    %v249 = vadd.f32 %v247, %v248
    %v250 = vmul.f32 %v48, %v237
    %v251 = vadd.f32 %v249, %v250
    %252 = vst [vmem:[%s246] sm:$0x1] %v251
    %s253 = scalar_lea.vmem [#allocation7], 14
    %v254 = vld [vmem:[%s253] sm:$0x1]
    %v255 = vmul.f32 %v46, %v251
    %v256 = vadd.f32 %v254, %v255
    %v257 = vmul.f32 %v48, %v244
    %v258 = vadd.f32 %v256, %v257
    %259 = vst [vmem:[%s253] sm:$0x1] %v258
    %s260 = scalar_lea.vmem [#allocation7], 15
    %v261 = vld [vmem:[%s260] sm:$0x1]
    %v262 = vmul.f32 %v46, %v258
    %v263 = vadd.f32 %v261, %v262
    %v264 = vmul.f32 %v48, %v251
    %v265 = vadd.f32 %v263, %v264
    %266 = vst [vmem:[%s260] sm:$0x1] %v265
    // Predicated region
    $region18: #{tpu_custom_call.1} parent=1 // pred_check
      _
    $region19: #{tpu_custom_call.1} parent=1 // pred_check_branch
      %268 = sbr.rel (0) target = $region21
    $region20: #{tpu_custom_call.1} parent=1 // pred_region
      %s270 = ssub.s32 256, 256
      %271 = vsyncadd [#allocation4], %s270
      %s272 = sshll.u32 [#allocation7], 4
      %s273 = int_to_ptr.vmem [resolvable:$true] %s272
      %278 = dma.vmem_to_hbm [thread:$0]  %s273, 256, %s2, [#allocation4], 16, 16, 1
    $region21: #{tpu_custom_call.1} parent=1 // pred_fallthru
      _
    // Predicated region
    $region22: #{tpu_custom_call.1} parent=1 // pred_check
      _
    $region23: #{tpu_custom_call.1} parent=1 // pred_check_branch
      %280 = sbr.rel (0) target = $region25
    $region24: #{tpu_custom_call.1} parent=1 // pred_region
      %281 = dma.done [#allocation4], 256
    $region25: #{tpu_custom_call.1} parent=1 // pred_fallthru
      _
    %282 = vsyncpa [#allocation3], 1
    %283 = vsyncpa [#allocation6], 1
    %284 = vsyncpa [#allocation4], 1

</llo_original>
